<compile_context>
chip_gen: v7x
topology: tpu7x:2x2x1
jax: 0.10.0
libtpu: 0.0.40
codegen_flags: <defaults>
</compile_context>

<pallas_src>
import functools

import jax
import jax.numpy as jnp
from jax.experimental import pallas as pl
from jax.experimental.pallas import tpu as pltpu

# --- env params (synthetic, small) -------------------------------------------
OBS_DIM = 10
GOAL_DIM = 6
ACT_DIM = 4
HIDDEN = 256
MAX_ACTION = 1.0
BATCH = 8


def _actor_kernel(x_ref,
                  w1_ref, b1_ref,
                  w2_ref, b2_ref,
                  w3_ref, b3_ref,
                  w4_ref, b4_ref,
                  o_ref, *, max_action):
    # fc1 + relu  (activations cast to the weight dtype -> bf16 MXU, f32 accumulate)
    h = jnp.dot(x_ref[...].astype(w1_ref.dtype), w1_ref[...],
                preferred_element_type=jnp.float32)
    h = jnp.maximum(h + b1_ref[...], 0.0)
    # fc2 + relu
    h = jnp.dot(h.astype(w2_ref.dtype), w2_ref[...],
                preferred_element_type=jnp.float32)
    h = jnp.maximum(h + b2_ref[...], 0.0)
    # fc3 + relu
    h = jnp.dot(h.astype(w3_ref.dtype), w3_ref[...],
                preferred_element_type=jnp.float32)
    h = jnp.maximum(h + b3_ref[...], 0.0)
    # action head: max_action * tanh(fc4)   (bias/tanh kept in f32)
    a = jnp.dot(h.astype(w4_ref.dtype), w4_ref[...],
                preferred_element_type=jnp.float32)
    o_ref[...] = max_action * jnp.tanh(a + b4_ref[...])


def _default_block_batch(B):
    """Largest batch tile that is a multiple of 8 sublanes, <= 512 rows
    (v7x 64 MiB VMEM headroom), and leaves >= 2 grid tiles once B >= 256
    so both v7x TensorCores are used.  Falls back to the full batch when
    B is tiny or not a multiple of 8 (full-extent blocks are always legal)."""
    if B <= 8 or B % 8 != 0:
        return B
    cap = min(512, B)
    if B >= 256:
        cap = min(cap, B // 2)
    best = 8
    cand = 8
    while cand <= cap:
        if B % cand == 0:
            best = cand
        cand += 8
    return best


def actor_forward(x, params, *, max_action=MAX_ACTION, block_batch=None,
                  compute_dtype=jnp.bfloat16):
    """x: (B, obs+goal) float32. params: dict of weights (in,out) and biases (1,out).

    compute_dtype: dtype fed to the MXU (bf16 default, f32 accumulation).
    Pass compute_dtype=jnp.float32 for bit-accurate f32 matmuls.
    """
    B, D = x.shape
    A = params["w4"].shape[1]
    if block_batch is None:
        block_batch = _default_block_batch(B)
    assert B % block_batch == 0, "batch must be divisible by block_batch"
    assert block_batch == B or block_batch % 8 == 0, (
        "block_batch must equal B or be a multiple of 8 (sublane tiling)")

    cd = jnp.dtype(compute_dtype)
    xc = x.astype(cd)
    w1, w2, w3, w4 = (params[k].astype(cd) for k in ("w1", "w2", "w3", "w4"))
    b1, b2, b3, b4 = (params[k].astype(jnp.float32) for k in ("b1", "b2", "b3", "b4"))

    # Lane-dense output: pad the head to a multiple of 128 output lanes so the
    # final store is an unmasked full-lane vst; slice back to A afterwards.
    A_pad = max(128, ((A + 127) // 128) * 128)
    w4p = jnp.pad(w4, ((0, 0), (0, A_pad - A)))
    b4p = jnp.pad(b4, ((0, 0), (0, A_pad - A)))

    grid = (B // block_batch,)

    # Weights/biases: full-extent blocks with a constant index_map -> they are
    # DMA'd once and stay resident in VMEM across all grid steps.
    full = lambda shape: pl.BlockSpec(shape, lambda i: (0, 0))

    out = pl.pallas_call(
        functools.partial(_actor_kernel, max_action=max_action),
        out_shape=jax.ShapeDtypeStruct((B, A_pad), jnp.float32),
        grid=grid,
        in_specs=[
            pl.BlockSpec((block_batch, D), lambda i: (i, 0)),   # x (batch-tiled)
            full(w1.shape), full(b1.shape),
            full(w2.shape), full(b2.shape),
            full(w3.shape), full(b3.shape),
            full(w4p.shape), full(b4p.shape),
        ],
        out_specs=pl.BlockSpec((block_batch, A_pad), lambda i: (i, 0)),
        compiler_params=pltpu.CompilerParams(
            dimension_semantics=("parallel",),          # megacore-shard batch tiles
            vmem_limit_bytes=64 * 1024 * 1024,          # headroom for large batch tiles
        ),
    )(xc, w1, b1, w2, b2, w3, b3, w4p, b4p)
    return out[:, :A]


def init_params(key):
    """Deterministic synthetic init (uniform, PyTorch-Linear-like bounds), f32."""
    dims = [(OBS_DIM + GOAL_DIM, HIDDEN), (HIDDEN, HIDDEN),
            (HIDDEN, HIDDEN), (HIDDEN, ACT_DIM)]
    params = {}
    for idx, (fan_in, fan_out) in enumerate(dims, start=1):
        key, kw, kb = jax.random.split(key, 3)
        bound = 1.0 / jnp.sqrt(fan_in)
        params[f"w{idx}"] = jax.random.uniform(
            kw, (fan_in, fan_out), jnp.float32, -bound, bound)
        params[f"b{idx}"] = jax.random.uniform(
            kb, (1, fan_out), jnp.float32, -bound, bound)
    return params


def actor_reference(x, params, *, compute_dtype=jnp.float32, max_action=MAX_ACTION):
    """Pure-JAX reference mirroring the kernel's dtype path (cast operands to
    compute_dtype, accumulate in f32, biases/tanh in f32)."""
    cd = jnp.dtype(compute_dtype)

    def lin(h, w, b):
        return jnp.dot(h.astype(cd), w.astype(cd),
                       preferred_element_type=jnp.float32) + b.astype(jnp.float32)

    h = jax.nn.relu(lin(x, params["w1"], params["b1"]))
    h = jax.nn.relu(lin(h, params["w2"], params["b2"]))
    h = jax.nn.relu(lin(h, params["w3"], params["b3"]))
    return max_action * jnp.tanh(lin(h, params["w4"], params["b4"]))


if __name__ == "__main__":
    key = jax.random.PRNGKey(0)
    key, kx = jax.random.split(key)
    params = init_params(key)

    # --- small batch, f32 compute path: exact vs f32 reference --------------
    x_small = jax.random.normal(kx, (BATCH, OBS_DIM + GOAL_DIM), jnp.float32)
    out = jax.block_until_ready(
        actor_forward(x_small, params, compute_dtype=jnp.float32))
    ref = actor_reference(x_small, params, compute_dtype=jnp.float32)
    assert out.shape == (BATCH, ACT_DIM)
    assert jnp.allclose(out, ref, atol=1e-5, rtol=1e-5)

    # --- tiled bf16 path: 128-row MXU tiles, grid=(2,) (both v7x TCs) -------
    key, kx2 = jax.random.split(key)
    B2 = 256
    x_big = jax.random.normal(kx2, (B2, OBS_DIM + GOAL_DIM), jnp.float32)
    out2 = jax.block_until_ready(
        actor_forward(x_big, params, compute_dtype=jnp.bfloat16))
    ref2 = actor_reference(x_big, params, compute_dtype=jnp.bfloat16)
    assert out2.shape == (B2, ACT_DIM)
    assert jnp.allclose(out2, ref2, atol=1e-2, rtol=1e-2)

    print("KERNEL_OK")
</pallas_src>

<mosaic_0001>
module attributes {stable_mosaic.version = 11 : i64} {
  func.func @_actor_kernel(%arg0: i32, %arg1: memref<8x16xf32, #tpu.memory_space<vmem>>, %arg2: memref<16x256xf32, #tpu.memory_space<vmem>>, %arg3: memref<1x256xf32, #tpu.memory_space<vmem>>, %arg4: memref<256x256xf32, #tpu.memory_space<vmem>>, %arg5: memref<1x256xf32, #tpu.memory_space<vmem>>, %arg6: memref<256x256xf32, #tpu.memory_space<vmem>>, %arg7: memref<1x256xf32, #tpu.memory_space<vmem>>, %arg8: memref<256x128xf32, #tpu.memory_space<vmem>>, %arg9: memref<1x128xf32, #tpu.memory_space<vmem>>, %arg10: memref<8x128xf32, #tpu.memory_space<vmem>>) attributes {dimension_semantics = [#tpu.dimension_semantics<parallel>], iteration_bounds = array<i64: 1>, scalar_prefetch = 0 : i64, scratch_operands = 0 : i64, tpu.core_type = #tpu.core_type<tc>, window_params = [{transform_indices = @transform_0, window_bounds = array<i64: 8, 16>}, {pipeline_mode = #tpu.pipeline_mode<synchronous>, transform_indices = @transform_1, window_bounds = array<i64: 16, 256>}, {pipeline_mode = #tpu.pipeline_mode<synchronous>, transform_indices = @transform_2, window_bounds = array<i64: 1, 256>}, {pipeline_mode = #tpu.pipeline_mode<synchronous>, transform_indices = @transform_3, window_bounds = array<i64: 256, 256>}, {pipeline_mode = #tpu.pipeline_mode<synchronous>, transform_indices = @transform_4, window_bounds = array<i64: 1, 256>}, {pipeline_mode = #tpu.pipeline_mode<synchronous>, transform_indices = @transform_5, window_bounds = array<i64: 256, 256>}, {pipeline_mode = #tpu.pipeline_mode<synchronous>, transform_indices = @transform_6, window_bounds = array<i64: 1, 256>}, {pipeline_mode = #tpu.pipeline_mode<synchronous>, transform_indices = @transform_7, window_bounds = array<i64: 256, 128>}, {pipeline_mode = #tpu.pipeline_mode<synchronous>, transform_indices = @transform_8, window_bounds = array<i64: 1, 128>}, {transform_indices = @transform_9, window_bounds = array<i64: 8, 128>}]} {
    %c0 = arith.constant 0 : index
    %c0_0 = arith.constant 0 : index
    %0 = vector.load %arg1[%c0, %c0_0] : memref<8x16xf32, #tpu.memory_space<vmem>>, vector<8x16xf32>
    %c0_1 = arith.constant 0 : index
    %c0_2 = arith.constant 0 : index
    %1 = vector.load %arg2[%c0_1, %c0_2] : memref<16x256xf32, #tpu.memory_space<vmem>>, vector<16x256xf32>
    %cst = arith.constant dense<0.000000e+00> : vector<8x256xf32>
    %2 = tpu.matmul %0, %1, %cst {dimension_numbers = #tpu.dot_dimension_numbers<[1], [0], [0], [1], [0, 0, 1, 1], [], []>} : vector<8x16xf32>, vector<16x256xf32>, vector<8x256xf32> -> vector<8x256xf32>
    %c0_3 = arith.constant 0 : index
    %c0_4 = arith.constant 0 : index
    %3 = vector.load %arg3[%c0_3, %c0_4] : memref<1x256xf32, #tpu.memory_space<vmem>>, vector<1x256xf32>
    %4 = vector.broadcast %3 : vector<1x256xf32> to vector<8x256xf32>
    %5 = arith.addf %2, %4 : vector<8x256xf32>
    %cst_5 = arith.constant 0.000000e+00 : f32
    %6 = vector.broadcast %cst_5 : f32 to vector<8x256xf32>
    %7 = arith.maximumf %5, %6 : vector<8x256xf32>
    %c0_6 = arith.constant 0 : index
    %c0_7 = arith.constant 0 : index
    %8 = vector.load %arg4[%c0_6, %c0_7] : memref<256x256xf32, #tpu.memory_space<vmem>>, vector<256x256xf32>
    %cst_8 = arith.constant dense<0.000000e+00> : vector<8x256xf32>
    %9 = tpu.matmul %7, %8, %cst_8 {dimension_numbers = #tpu.dot_dimension_numbers<[1], [0], [0], [1], [0, 0, 1, 1], [], []>} : vector<8x256xf32>, vector<256x256xf32>, vector<8x256xf32> -> vector<8x256xf32>
    %c0_9 = arith.constant 0 : index
    %c0_10 = arith.constant 0 : index
    %10 = vector.load %arg5[%c0_9, %c0_10] : memref<1x256xf32, #tpu.memory_space<vmem>>, vector<1x256xf32>
    %11 = vector.broadcast %10 : vector<1x256xf32> to vector<8x256xf32>
    %12 = arith.addf %9, %11 : vector<8x256xf32>
    %cst_11 = arith.constant 0.000000e+00 : f32
    %13 = vector.broadcast %cst_11 : f32 to vector<8x256xf32>
    %14 = arith.maximumf %12, %13 : vector<8x256xf32>
    %c0_12 = arith.constant 0 : index
    %c0_13 = arith.constant 0 : index
    %15 = vector.load %arg6[%c0_12, %c0_13] : memref<256x256xf32, #tpu.memory_space<vmem>>, vector<256x256xf32>
    %cst_14 = arith.constant dense<0.000000e+00> : vector<8x256xf32>
    %16 = tpu.matmul %14, %15, %cst_14 {dimension_numbers = #tpu.dot_dimension_numbers<[1], [0], [0], [1], [0, 0, 1, 1], [], []>} : vector<8x256xf32>, vector<256x256xf32>, vector<8x256xf32> -> vector<8x256xf32>
    %c0_15 = arith.constant 0 : index
    %c0_16 = arith.constant 0 : index
    %17 = vector.load %arg7[%c0_15, %c0_16] : memref<1x256xf32, #tpu.memory_space<vmem>>, vector<1x256xf32>
    %18 = vector.broadcast %17 : vector<1x256xf32> to vector<8x256xf32>
    %19 = arith.addf %16, %18 : vector<8x256xf32>
    %cst_17 = arith.constant 0.000000e+00 : f32
    %20 = vector.broadcast %cst_17 : f32 to vector<8x256xf32>
    %21 = arith.maximumf %19, %20 : vector<8x256xf32>
    %c0_18 = arith.constant 0 : index
    %c0_19 = arith.constant 0 : index
    %22 = vector.load %arg8[%c0_18, %c0_19] : memref<256x128xf32, #tpu.memory_space<vmem>>, vector<256x128xf32>
    %cst_20 = arith.constant dense<0.000000e+00> : vector<8x128xf32>
    %23 = tpu.matmul %21, %22, %cst_20 {dimension_numbers = #tpu.dot_dimension_numbers<[1], [0], [0], [1], [0, 0, 1, 1], [], []>} : vector<8x256xf32>, vector<256x128xf32>, vector<8x128xf32> -> vector<8x128xf32>
    %c0_21 = arith.constant 0 : index
    %c0_22 = arith.constant 0 : index
    %24 = vector.load %arg9[%c0_21, %c0_22] : memref<1x128xf32, #tpu.memory_space<vmem>>, vector<1x128xf32>
    %25 = vector.broadcast %24 : vector<1x128xf32> to vector<8x128xf32>
    %26 = arith.addf %23, %25 : vector<8x128xf32>
    %27 = math.tanh %26 : vector<8x128xf32>
    %cst_23 = arith.constant 1.000000e+00 : f32
    %28 = vector.broadcast %cst_23 : f32 to vector<8x128xf32>
    %29 = arith.mulf %28, %27 : vector<8x128xf32>
    %c0_24 = arith.constant 0 : index
    %c0_25 = arith.constant 0 : index
    %30 = vector.load %arg10[%c0_24, %c0_25] : memref<8x128xf32, #tpu.memory_space<vmem>>, vector<8x128xf32>
    tpu.vector_store %arg10[%c0_24, %c0_25], %29 {strides = array<i32>} : memref<8x128xf32, #tpu.memory_space<vmem>>, vector<8x128xf32>,
    return
  }
  func.func @transform_0(%arg0: i32) -> (i32, i32) {
    %c0_i32 = arith.constant 0 : i32
    %c0_i32_0 = arith.constant 0 : i32
    return %arg0, %c0_i32 : i32, i32
  }
  func.func @transform_1(%arg0: i32) -> (i32, i32) {
    %c0_i32 = arith.constant 0 : i32
    %c0_i32_0 = arith.constant 0 : i32
    %c0_i32_1 = arith.constant 0 : i32
    return %c0_i32, %c0_i32_0 : i32, i32
  }
  func.func @transform_2(%arg0: i32) -> (i32, i32) {
    %c0_i32 = arith.constant 0 : i32
    %c0_i32_0 = arith.constant 0 : i32
    %c0_i32_1 = arith.constant 0 : i32
    return %c0_i32, %c0_i32_0 : i32, i32
  }
  func.func @transform_3(%arg0: i32) -> (i32, i32) {
    %c0_i32 = arith.constant 0 : i32
    %c0_i32_0 = arith.constant 0 : i32
    %c0_i32_1 = arith.constant 0 : i32
    return %c0_i32, %c0_i32_0 : i32, i32
  }
  func.func @transform_4(%arg0: i32) -> (i32, i32) {
    %c0_i32 = arith.constant 0 : i32
    %c0_i32_0 = arith.constant 0 : i32
    %c0_i32_1 = arith.constant 0 : i32
    return %c0_i32, %c0_i32_0 : i32, i32
  }
  func.func @transform_5(%arg0: i32) -> (i32, i32) {
    %c0_i32 = arith.constant 0 : i32
    %c0_i32_0 = arith.constant 0 : i32
    %c0_i32_1 = arith.constant 0 : i32
    return %c0_i32, %c0_i32_0 : i32, i32
  }
  func.func @transform_6(%arg0: i32) -> (i32, i32) {
    %c0_i32 = arith.constant 0 : i32
    %c0_i32_0 = arith.constant 0 : i32
    %c0_i32_1 = arith.constant 0 : i32
    return %c0_i32, %c0_i32_0 : i32, i32
  }
  func.func @transform_7(%arg0: i32) -> (i32, i32) {
    %c0_i32 = arith.constant 0 : i32
    %c0_i32_0 = arith.constant 0 : i32
    %c0_i32_1 = arith.constant 0 : i32
    return %c0_i32, %c0_i32_0 : i32, i32
  }
  func.func @transform_8(%arg0: i32) -> (i32, i32) {
    %c0_i32 = arith.constant 0 : i32
    %c0_i32_0 = arith.constant 0 : i32
    %c0_i32_1 = arith.constant 0 : i32
    return %c0_i32, %c0_i32_0 : i32, i32
  }
  func.func @transform_9(%arg0: i32) -> (i32, i32) {
    %c0_i32 = arith.constant 0 : i32
    %c0_i32_0 = arith.constant 0 : i32
    return %arg0, %c0_i32 : i32, i32
  }
}

</mosaic_0001>

<llo_original>
// kernel: tpu_custom_call.1
$region0: #{tpu_custom_call.1}
  #allocation0 [shape = 'u32[]', space=smem, size = 0x4, offset = 0x4, fixed_abs, tag = 'smem constant byte address 0x4 - core index']
  #allocation1 [shape = 'u32[144,128]{1,0:T(1,128)}', space=vmem, size = 0x12000, scoped, tag = 'internal scratch']
  %s0 = inlined_call_operand.hbm [shape: f32[8,16], index: 0, kind: input, shape index: {}]
  %s1 = inlined_call_operand.hbm [shape: f32[16,256], index: 1, kind: input, shape index: {}]
  %s2 = inlined_call_operand.hbm [shape: f32[1,256], index: 2, kind: input, shape index: {}]
  %s3 = inlined_call_operand.hbm [shape: f32[256,256], index: 3, kind: input, shape index: {}]
  %s4 = inlined_call_operand.hbm [shape: f32[1,256], index: 4, kind: input, shape index: {}]
  %s5 = inlined_call_operand.hbm [shape: f32[256,256], index: 5, kind: input, shape index: {}]
  %s6 = inlined_call_operand.hbm [shape: f32[1,256], index: 6, kind: input, shape index: {}]
  %s7 = inlined_call_operand.hbm [shape: f32[256,128], index: 7, kind: input, shape index: {}]
  %s8 = inlined_call_operand.hbm [shape: f32[1,128], index: 8, kind: input, shape index: {}]
  %s9 = inlined_call_operand.hbm [shape: f32[8,128], index: 9, kind: output, shape index: {}]
  %s10 = sld [smem:[#allocation0]]
  $region82: #{tpu_custom_call.1} parent=0
    _
  %s12 = ssub.s32 1, %s10
  %s13 = scalar_select 0, %s12, %s10
  $region1: #{tpu_custom_call.1} parent=0
    #allocation2 [shape = 'u8[4096]{0}', space=vmem, size = 0x1000, scoped, tag = 'input window, operand 0, single buffered']
    #allocation3 [shape = 's32[1]{0}', space=sflag, size = 0x4, scoped, tag = 'scoped memory for tpu_custom_call.1']
    #allocation4 [shape = 's32[1]{0}', space=sflag, size = 0x4, scoped, tag = 'scoped memory for tpu_custom_call.1']
    #allocation5 [shape = 'u8[16384]{0}', space=vmem, size = 0x4000, scoped, tag = 'input window, operand 1, single buffered']
    #allocation6 [shape = 's32[1]{0}', space=sflag, size = 0x4, scoped, tag = 'scoped memory for tpu_custom_call.1']
    #allocation7 [shape = 'u8[1024]{0}', space=vmem, size = 0x400, scoped, tag = 'input window, operand 2, single buffered']
    #allocation8 [shape = 'u8[262144]{0}', space=vmem, size = 0x40000, scoped, tag = 'input window, operand 3, single buffered']
    #allocation9 [shape = 's32[1]{0}', space=sflag, size = 0x4, scoped, tag = 'scoped memory for tpu_custom_call.1']
    #allocation10 [shape = 'u8[1024]{0}', space=vmem, size = 0x400, scoped, tag = 'input window, operand 4, single buffered']
    #allocation11 [shape = 'u8[262144]{0}', space=vmem, size = 0x40000, scoped, tag = 'input window, operand 5, single buffered']
    #allocation12 [shape = 's32[1]{0}', space=sflag, size = 0x4, scoped, tag = 'scoped memory for tpu_custom_call.1']
    #allocation13 [shape = 'u8[1024]{0}', space=vmem, size = 0x400, scoped, tag = 'input window, operand 6, single buffered']
    #allocation14 [shape = 'u8[131072]{0}', space=vmem, size = 0x20000, scoped, tag = 'input window, operand 7, single buffered']
    #allocation15 [shape = 's32[1]{0}', space=sflag, size = 0x4, scoped, tag = 'scoped memory for tpu_custom_call.1']
    #allocation16 [shape = 'u8[512]{0}', space=vmem, size = 0x400, scoped, tag = 'input window, operand 8, single buffered']
    #allocation17 [shape = 'u8[4096]{0}', space=vmem, size = 0x1000, scoped, tag = 'output window, operand 0, single buffered']
    %14 = vsyncpa [#allocation3], 0
    %15 = vsyncpa [#allocation6], 0
    %16 = vsyncpa [#allocation9], 0
    %17 = vsyncpa [#allocation12], 0
    %18 = vsyncpa [#allocation15], 0
    %19 = vsyncpa [#allocation4], 0
    // Predicated region
    $region2: #{tpu_custom_call.1} parent=1 // pred_check
      _
    $region3: #{tpu_custom_call.1} parent=1 // pred_check_branch
      %21 = sbr.rel (0) target = $region5
    $region4: #{tpu_custom_call.1} parent=1 // pred_region
      %s23 = ssub.s32 128, 128
      %24 = vsyncadd [#allocation3], %s23
      %s26 = sshll.u32 [#allocation2], 4
      %s27 = int_to_ptr.vmem [resolvable:$true] %s26
      %29 = dma.hbm_to_vmem [thread:$0]  %s0, 128, %s27, [#allocation3]
    $region5: #{tpu_custom_call.1} parent=1 // pred_fallthru
      _
    // Predicated region
    $region6: #{tpu_custom_call.1} parent=1 // pred_check
      _
    $region7: #{tpu_custom_call.1} parent=1 // pred_check_branch
      %31 = sbr.rel (0) target = $region9
    $region8: #{tpu_custom_call.1} parent=1 // pred_region
      %s33 = ssub.s32 512, 512
      %34 = vsyncadd [#allocation6], %s33
      %s35 = sshll.u32 [#allocation5], 4
      %s36 = int_to_ptr.vmem [resolvable:$true] %s35
      %41 = dma.hbm_to_vmem [thread:$0]  %s1, 512, %s36, [#allocation6], 256, 256, 16
    $region9: #{tpu_custom_call.1} parent=1 // pred_fallthru
      _
    // Predicated region
    $region10: #{tpu_custom_call.1} parent=1 // pred_check
      _
    $region11: #{tpu_custom_call.1} parent=1 // pred_check_branch
      %43 = sbr.rel (0) target = $region13
    $region12: #{tpu_custom_call.1} parent=1 // pred_region
      %s45 = ssub.s32 32, 32
      %46 = vsyncadd [#allocation6], %s45
      %s48 = sshll.u32 [#allocation7], 4
      %s49 = int_to_ptr.vmem [resolvable:$true] %s48
      %51 = dma.hbm_to_vmem [thread:$0]  %s2, 32, %s49, [#allocation6]
    $region13: #{tpu_custom_call.1} parent=1 // pred_fallthru
      _
    // Predicated region
    $region14: #{tpu_custom_call.1} parent=1 // pred_check
      _
    $region15: #{tpu_custom_call.1} parent=1 // pred_check_branch
      %53 = sbr.rel (0) target = $region17
    $region16: #{tpu_custom_call.1} parent=1 // pred_region
      %s55 = ssub.s32 8192, 8192
      %56 = vsyncadd [#allocation9], %s55
      %s57 = sshll.u32 [#allocation8], 4
      %s58 = int_to_ptr.vmem [resolvable:$true] %s57
      %63 = dma.hbm_to_vmem [thread:$0]  %s3, 8192, %s58, [#allocation9], 256, 256, 16
    $region17: #{tpu_custom_call.1} parent=1 // pred_fallthru
      _
    // Predicated region
    $region18: #{tpu_custom_call.1} parent=1 // pred_check
      _
    $region19: #{tpu_custom_call.1} parent=1 // pred_check_branch
      %65 = sbr.rel (0) target = $region21
    $region20: #{tpu_custom_call.1} parent=1 // pred_region
      %s67 = ssub.s32 32, 32
      %68 = vsyncadd [#allocation9], %s67
      %s70 = sshll.u32 [#allocation10], 4
      %s71 = int_to_ptr.vmem [resolvable:$true] %s70
      %73 = dma.hbm_to_vmem [thread:$0]  %s4, 32, %s71, [#allocation9]
    $region21: #{tpu_custom_call.1} parent=1 // pred_fallthru
      _
    // Predicated region
    $region22: #{tpu_custom_call.1} parent=1 // pred_check
      _
    $region23: #{tpu_custom_call.1} parent=1 // pred_check_branch
      %75 = sbr.rel (0) target = $region25
    $region24: #{tpu_custom_call.1} parent=1 // pred_region
      %s77 = ssub.s32 8192, 8192
      %78 = vsyncadd [#allocation12], %s77
      %s79 = sshll.u32 [#allocation11], 4
      %s80 = int_to_ptr.vmem [resolvable:$true] %s79
      %85 = dma.hbm_to_vmem [thread:$0]  %s5, 8192, %s80, [#allocation12], 256, 256, 16
    $region25: #{tpu_custom_call.1} parent=1 // pred_fallthru
      _
    // Predicated region
    $region26: #{tpu_custom_call.1} parent=1 // pred_check
      _
    $region27: #{tpu_custom_call.1} parent=1 // pred_check_branch
      %87 = sbr.rel (0) target = $region29
    $region28: #{tpu_custom_call.1} parent=1 // pred_region
      %s89 = ssub.s32 32, 32
      %90 = vsyncadd [#allocation12], %s89
      %s92 = sshll.u32 [#allocation13], 4
      %s93 = int_to_ptr.vmem [resolvable:$true] %s92
      %95 = dma.hbm_to_vmem [thread:$0]  %s6, 32, %s93, [#allocation12]
    $region29: #{tpu_custom_call.1} parent=1 // pred_fallthru
      _
    // Predicated region
    $region30: #{tpu_custom_call.1} parent=1 // pred_check
      _
    $region31: #{tpu_custom_call.1} parent=1 // pred_check_branch
      %97 = sbr.rel (0) target = $region33
    $region32: #{tpu_custom_call.1} parent=1 // pred_region
      %s99 = ssub.s32 4096, 4096
      %100 = vsyncadd [#allocation15], %s99
      %s101 = sshll.u32 [#allocation14], 4
      %s102 = int_to_ptr.vmem [resolvable:$true] %s101
      %107 = dma.hbm_to_vmem [thread:$0]  %s7, 4096, %s102, [#allocation15], 128, 128, 8
    $region33: #{tpu_custom_call.1} parent=1 // pred_fallthru
      _
    // Predicated region
    $region34: #{tpu_custom_call.1} parent=1 // pred_check
      _
    $region35: #{tpu_custom_call.1} parent=1 // pred_check_branch
      %109 = sbr.rel (0) target = $region37
    $region36: #{tpu_custom_call.1} parent=1 // pred_region
      %s111 = ssub.s32 16, 16
      %112 = vsyncadd [#allocation15], %s111
      %s114 = sshll.u32 [#allocation16], 4
      %s115 = int_to_ptr.vmem [resolvable:$true] %s114
      %117 = dma.hbm_to_vmem [thread:$0]  %s8, 16, %s115, [#allocation15]
    $region37: #{tpu_custom_call.1} parent=1 // pred_fallthru
      _
    // Predicated region
    $region38: #{tpu_custom_call.1} parent=1 // pred_check
      _
    $region39: #{tpu_custom_call.1} parent=1 // pred_check_branch
      %119 = sbr.rel (0) target = $region41
    $region40: #{tpu_custom_call.1} parent=1 // pred_region
      %120 = dma.done [#allocation3], 128
    $region41: #{tpu_custom_call.1} parent=1 // pred_fallthru
      _
    // Predicated region
    $region42: #{tpu_custom_call.1} parent=1 // pred_check
      _
    $region43: #{tpu_custom_call.1} parent=1 // pred_check_branch
      %122 = sbr.rel (0) target = $region45
    $region44: #{tpu_custom_call.1} parent=1 // pred_region
      %123 = dma.done [#allocation6], 512
    $region45: #{tpu_custom_call.1} parent=1 // pred_fallthru
      _
    // Predicated region
    $region46: #{tpu_custom_call.1} parent=1 // pred_check
      _
    $region47: #{tpu_custom_call.1} parent=1 // pred_check_branch
      %125 = sbr.rel (0) target = $region49
    $region48: #{tpu_custom_call.1} parent=1 // pred_region
      %126 = dma.done [#allocation6], 32
    $region49: #{tpu_custom_call.1} parent=1 // pred_fallthru
      _
    // Predicated region
    $region50: #{tpu_custom_call.1} parent=1 // pred_check
      _
    $region51: #{tpu_custom_call.1} parent=1 // pred_check_branch
      %128 = sbr.rel (0) target = $region53
    $region52: #{tpu_custom_call.1} parent=1 // pred_region
      %129 = dma.done [#allocation9], 8192
    $region53: #{tpu_custom_call.1} parent=1 // pred_fallthru
      _
    // Predicated region
    $region54: #{tpu_custom_call.1} parent=1 // pred_check
      _
    $region55: #{tpu_custom_call.1} parent=1 // pred_check_branch
      %131 = sbr.rel (0) target = $region57
    $region56: #{tpu_custom_call.1} parent=1 // pred_region
      %132 = dma.done [#allocation9], 32
    $region57: #{tpu_custom_call.1} parent=1 // pred_fallthru
      _
    // Predicated region
    $region58: #{tpu_custom_call.1} parent=1 // pred_check
      _
    $region59: #{tpu_custom_call.1} parent=1 // pred_check_branch
      %134 = sbr.rel (0) target = $region61
    $region60: #{tpu_custom_call.1} parent=1 // pred_region
      %135 = dma.done [#allocation12], 8192
    $region61: #{tpu_custom_call.1} parent=1 // pred_fallthru
      _
    // Predicated region
    $region62: #{tpu_custom_call.1} parent=1 // pred_check
      _
    $region63: #{tpu_custom_call.1} parent=1 // pred_check_branch
      %137 = sbr.rel (0) target = $region65
    $region64: #{tpu_custom_call.1} parent=1 // pred_region
      %138 = dma.done [#allocation12], 32
    $region65: #{tpu_custom_call.1} parent=1 // pred_fallthru
      _
    // Predicated region
    $region66: #{tpu_custom_call.1} parent=1 // pred_check
      _
    $region67: #{tpu_custom_call.1} parent=1 // pred_check_branch
      %140 = sbr.rel (0) target = $region69
    $region68: #{tpu_custom_call.1} parent=1 // pred_region
      %141 = dma.done [#allocation15], 4096
    $region69: #{tpu_custom_call.1} parent=1 // pred_fallthru
      _
    // Predicated region
    $region70: #{tpu_custom_call.1} parent=1 // pred_check
      _
    $region71: #{tpu_custom_call.1} parent=1 // pred_check_branch
      %143 = sbr.rel (0) target = $region73
    $region72: #{tpu_custom_call.1} parent=1 // pred_region
      %144 = dma.done [#allocation15], 16
    $region73: #{tpu_custom_call.1} parent=1 // pred_fallthru
      _
    %v145 = vld [vmem:[#allocation2] sm:$0xff]
    %v146 = vld [vmem:[#allocation5] sm:$0xff]
    %v147 = vld [vmem:[#allocation5 + $0x8] sm:$0xff]
    %v148 = vld [vmem:[#allocation5 + $0x10] sm:$0xff]
    %v149 = vld [vmem:[#allocation5 + $0x18] sm:$0xff]
    %v150 = vld [vmem:[#allocation7] sm:$0x3]
    %v152 = vlaneseq
    %v153 = vshrl.u32 %v152, 7
    %v154 = vsub.s32 0, %v153
    %v155 = vrot.slane %v150, %v154
    %v156 = vlaneseq
    %v157 = vshrl.u32 %v156, 7
    %v158 = vsub.s32 1, %v157
    %v159 = vrot.slane %v150, %v158
    %vm162 = vcmask 130048
    %v164 = vsel %vm162, %v145, 0
    %166 = vmatprep.subr.mxu0 %v147
    %167 = vmatpush1.msra.mxu0 %v146
    %168 = vmatprep.subr.mxu0 %v149
    %169 = vmatpush1.msra.mxu0 %v148
    %170 = vmatprep.subr.mxu0 0.0
    %171 = vmatpush1.msra.mxu0 0.0
    %172 = vmatprep.subr.mxu0 0.0
    %173 = vmatpush1.msra.mxu0 0.0
    %174 = vmatprep.subr.mxu0 0.0
    %175 = vmatpush1.msra.mxu0 0.0
    %176 = vmatprep.subr.mxu0 0.0
    %177 = vmatpush1.msra.mxu0 0.0
    %178 = vmatprep.subr.mxu0 0.0
    %179 = vmatpush1.msra.mxu0 0.0
    %180 = vmatprep.subr.mxu0 0.0
    %181 = vmatpush1.msra.mxu0 0.0
    %182 = vmatprep.subr.mxu0 0.0
    %183 = vmatpush1.msra.mxu0 0.0
    %184 = vmatprep.subr.mxu0 0.0
    %185 = vmatpush1.msra.mxu0 0.0
    %186 = vmatprep.subr.mxu0 0.0
    %187 = vmatpush1.msra.mxu0 0.0
    %188 = vmatprep.subr.mxu0 0.0
    %189 = vmatpush1.msra.mxu0 0.0
    %190 = vmatprep.subr.mxu0 0.0
    %191 = vmatpush1.msra.mxu0 0.0
    %192 = vmatprep.subr.mxu0 0.0
    %193 = vmatpush1.msra.mxu0 0.0
    %194 = vmatprep.subr.mxu0 0.0
    %195 = vmatpush1.msra.mxu0 0.0
    %196 = vmatprep.subr.mxu0 0.0
    %197 = vmatpush1.msra.mxu0 0.0
    %198 = vmatprep.subr.mxu0 0.0
    %199 = vmatpush1.msra.mxu0 0.0
    %200 = vmatprep.subr.mxu0 0.0
    %201 = vmatpush1.msra.mxu0 0.0
    %202 = vmatprep.subr.mxu0 0.0
    %203 = vmatpush1.msra.mxu0 0.0
    %204 = vmatprep.subr.mxu0 0.0
    %205 = vmatpush1.msra.mxu0 0.0
    %206 = vmatprep.subr.mxu0 0.0
    %207 = vmatpush1.msra.mxu0 0.0
    %208 = vmatprep.subr.mxu0 0.0
    %209 = vmatpush1.msra.mxu0 0.0
    %210 = vmatprep.subr.mxu0 0.0
    %211 = vmatpush1.msra.mxu0 0.0
    %212 = vmatprep.subr.mxu0 0.0
    %213 = vmatpush1.msra.mxu0 0.0
    %214 = vmatprep.subr.mxu0 0.0
    %215 = vmatpush1.msra.mxu0 0.0
    %216 = vmatprep.subr.mxu0 0.0
    %217 = vmatpush1.msra.mxu0 0.0
    %218 = vmatprep.subr.mxu0 0.0
    %219 = vmatpush1.msra.mxu0 0.0
    %220 = vmatprep.subr.mxu0 0.0
    %221 = vmatpush1.msra.mxu0 0.0
    %222 = vmatprep.subr.mxu0 0.0
    %223 = vmatpush1.msra.mxu0 0.0
    %224 = vmatprep.subr.mxu0 0.0
    %225 = vmatpush1.msra.mxu0 0.0
    %226 = vmatprep.subr.mxu0 0.0
    %227 = vmatpush1.msra.mxu0 0.0
    %228 = vmatprep.subr.mxu0 0.0
    %229 = vmatpush1.msra.mxu0 0.0
    %230 = vmatprep.mubr.f32.mxu0 0.0
    %231 = vmatmul.mubr.f32.gmra.mrb[0].mxu0 %v164
    %v232 = vpop.f32.mrb[0].mxu0
    %v233 = vadd.f32 %v155, %v232
    %v234 = vpop.f32.mrb[0].mxu0
    %v235 = vadd.f32 %v159, %v234
    %236 = vdwg.mxu0
    %v237 = vmax.f32 %v233, 0.0
    %v238 = vmax.f32 %v235, 0.0
    %v239 = vld [vmem:[#allocation8] sm:$0xff]
    %v240 = vld [vmem:[#allocation8 + $0x8] sm:$0xff]
    %v241 = vld [vmem:[#allocation8 + $0x10] sm:$0xff]
    %v242 = vld [vmem:[#allocation8 + $0x18] sm:$0xff]
    %v243 = vld [vmem:[#allocation8 + $0x20] sm:$0xff]
    %v244 = vld [vmem:[#allocation8 + $0x28] sm:$0xff]
    %v245 = vld [vmem:[#allocation8 + $0x30] sm:$0xff]
    %v246 = vld [vmem:[#allocation8 + $0x38] sm:$0xff]
    %v247 = vld [vmem:[#allocation8 + $0x40] sm:$0xff]
    %v248 = vld [vmem:[#allocation8 + $0x48] sm:$0xff]
    %v249 = vld [vmem:[#allocation8 + $0x50] sm:$0xff]
    %v250 = vld [vmem:[#allocation8 + $0x58] sm:$0xff]
    %v251 = vld [vmem:[#allocation8 + $0x60] sm:$0xff]
    %v252 = vld [vmem:[#allocation8 + $0x68] sm:$0xff]
    %v253 = vld [vmem:[#allocation8 + $0x70] sm:$0xff]
    %v254 = vld [vmem:[#allocation8 + $0x78] sm:$0xff]
    %v255 = vld [vmem:[#allocation8 + $0x80] sm:$0xff]
    %v256 = vld [vmem:[#allocation8 + $0x88] sm:$0xff]
    %v257 = vld [vmem:[#allocation8 + $0x90] sm:$0xff]
    %v258 = vld [vmem:[#allocation8 + $0x98] sm:$0xff]
    %v259 = vld [vmem:[#allocation8 + $0xa0] sm:$0xff]
    %v260 = vld [vmem:[#allocation8 + $0xa8] sm:$0xff]
    %v261 = vld [vmem:[#allocation8 + $0xb0] sm:$0xff]
    %v262 = vld [vmem:[#allocation8 + $0xb8] sm:$0xff]
    %v263 = vld [vmem:[#allocation8 + $0xc0] sm:$0xff]
    %v264 = vld [vmem:[#allocation8 + $0xc8] sm:$0xff]
    %v265 = vld [vmem:[#allocation8 + $0xd0] sm:$0xff]
    %v266 = vld [vmem:[#allocation8 + $0xd8] sm:$0xff]
    %v267 = vld [vmem:[#allocation8 + $0xe0] sm:$0xff]
    %v268 = vld [vmem:[#allocation8 + $0xe8] sm:$0xff]
    %v269 = vld [vmem:[#allocation8 + $0xf0] sm:$0xff]
    %v270 = vld [vmem:[#allocation8 + $0xf8] sm:$0xff]
    %v271 = vld [vmem:[#allocation8 + $0x100] sm:$0xff]
    %v272 = vld [vmem:[#allocation8 + $0x108] sm:$0xff]
    %v273 = vld [vmem:[#allocation8 + $0x110] sm:$0xff]
    %v274 = vld [vmem:[#allocation8 + $0x118] sm:$0xff]
    %v275 = vld [vmem:[#allocation8 + $0x120] sm:$0xff]
    %v276 = vld [vmem:[#allocation8 + $0x128] sm:$0xff]
    %v277 = vld [vmem:[#allocation8 + $0x130] sm:$0xff]
    %v278 = vld [vmem:[#allocation8 + $0x138] sm:$0xff]
    %v279 = vld [vmem:[#allocation8 + $0x140] sm:$0xff]
    %v280 = vld [vmem:[#allocation8 + $0x148] sm:$0xff]
    %v281 = vld [vmem:[#allocation8 + $0x150] sm:$0xff]
    %v282 = vld [vmem:[#allocation8 + $0x158] sm:$0xff]
    %v283 = vld [vmem:[#allocation8 + $0x160] sm:$0xff]
    %v284 = vld [vmem:[#allocation8 + $0x168] sm:$0xff]
    %v285 = vld [vmem:[#allocation8 + $0x170] sm:$0xff]
    %v286 = vld [vmem:[#allocation8 + $0x178] sm:$0xff]
    %v287 = vld [vmem:[#allocation8 + $0x180] sm:$0xff]
    %v288 = vld [vmem:[#allocation8 + $0x188] sm:$0xff]
    %v289 = vld [vmem:[#allocation8 + $0x190] sm:$0xff]
    %v290 = vld [vmem:[#allocation8 + $0x198] sm:$0xff]
    %v291 = vld [vmem:[#allocation8 + $0x1a0] sm:$0xff]
    %v292 = vld [vmem:[#allocation8 + $0x1a8] sm:$0xff]
    %v293 = vld [vmem:[#allocation8 + $0x1b0] sm:$0xff]
    %v294 = vld [vmem:[#allocation8 + $0x1b8] sm:$0xff]
    %v295 = vld [vmem:[#allocation8 + $0x1c0] sm:$0xff]
    %v296 = vld [vmem:[#allocation8 + $0x1c8] sm:$0xff]
    %v297 = vld [vmem:[#allocation8 + $0x1d0] sm:$0xff]
    %v298 = vld [vmem:[#allocation8 + $0x1d8] sm:$0xff]
    %v299 = vld [vmem:[#allocation8 + $0x1e0] sm:$0xff]
    %v300 = vld [vmem:[#allocation8 + $0x1e8] sm:$0xff]
    %v301 = vld [vmem:[#allocation8 + $0x1f0] sm:$0xff]
    %v302 = vld [vmem:[#allocation8 + $0x1f8] sm:$0xff]
    %v303 = vld [vmem:[#allocation10] sm:$0x3]
    %v305 = vlaneseq
    %v306 = vshrl.u32 %v305, 7
    %v307 = vsub.s32 0, %v306
    %v308 = vrot.slane %v303, %v307
    %v309 = vlaneseq
    %v310 = vshrl.u32 %v309, 7
    %v311 = vsub.s32 1, %v310
    %v312 = vrot.slane %v303, %v311
    %315 = vmatprep.subr.mxu0 %v240
    %316 = vmatpush1.msra.mxu0 %v239
    %317 = vmatprep.subr.mxu0 %v242
    %318 = vmatpush1.msra.mxu0 %v241
    %319 = vmatprep.subr.mxu0 %v244
    %320 = vmatpush1.msra.mxu0 %v243
    %321 = vmatprep.subr.mxu0 %v246
    %322 = vmatpush1.msra.mxu0 %v245
    %323 = vmatprep.subr.mxu0 %v248
    %324 = vmatpush1.msra.mxu0 %v247
    %325 = vmatprep.subr.mxu0 %v250
    %326 = vmatpush1.msra.mxu0 %v249
    %327 = vmatprep.subr.mxu0 %v252
    %328 = vmatpush1.msra.mxu0 %v251
    %329 = vmatprep.subr.mxu0 %v254
    %330 = vmatpush1.msra.mxu0 %v253
    %331 = vmatprep.subr.mxu0 %v256
    %332 = vmatpush1.msra.mxu0 %v255
    %333 = vmatprep.subr.mxu0 %v258
    %334 = vmatpush1.msra.mxu0 %v257
    %335 = vmatprep.subr.mxu0 %v260
    %336 = vmatpush1.msra.mxu0 %v259
    %337 = vmatprep.subr.mxu0 %v262
    %338 = vmatpush1.msra.mxu0 %v261
    %339 = vmatprep.subr.mxu0 %v264
    %340 = vmatpush1.msra.mxu0 %v263
    %341 = vmatprep.subr.mxu0 %v266
    %342 = vmatpush1.msra.mxu0 %v265
    %343 = vmatprep.subr.mxu0 %v268
    %344 = vmatpush1.msra.mxu0 %v267
    %345 = vmatprep.subr.mxu0 %v270
    %346 = vmatpush1.msra.mxu0 %v269
    %347 = vmatprep.subr.mxu0 %v272
    %348 = vmatpush1.msra.mxu0 %v271
    %349 = vmatprep.subr.mxu0 %v274
    %350 = vmatpush1.msra.mxu0 %v273
    %351 = vmatprep.subr.mxu0 %v276
    %352 = vmatpush1.msra.mxu0 %v275
    %353 = vmatprep.subr.mxu0 %v278
    %354 = vmatpush1.msra.mxu0 %v277
    %355 = vmatprep.subr.mxu0 %v280
    %356 = vmatpush1.msra.mxu0 %v279
    %357 = vmatprep.subr.mxu0 %v282
    %358 = vmatpush1.msra.mxu0 %v281
    %359 = vmatprep.subr.mxu0 %v284
    %360 = vmatpush1.msra.mxu0 %v283
    %361 = vmatprep.subr.mxu0 %v286
    %362 = vmatpush1.msra.mxu0 %v285
    %363 = vmatprep.subr.mxu0 %v288
    %364 = vmatpush1.msra.mxu0 %v287
    %365 = vmatprep.subr.mxu0 %v290
    %366 = vmatpush1.msra.mxu0 %v289
    %367 = vmatprep.subr.mxu0 %v292
    %368 = vmatpush1.msra.mxu0 %v291
    %369 = vmatprep.subr.mxu0 %v294
    %370 = vmatpush1.msra.mxu0 %v293
    %371 = vmatprep.subr.mxu0 %v296
    %372 = vmatpush1.msra.mxu0 %v295
    %373 = vmatprep.subr.mxu0 %v298
    %374 = vmatpush1.msra.mxu0 %v297
    %375 = vmatprep.subr.mxu0 %v300
    %376 = vmatpush1.msra.mxu0 %v299
    %377 = vmatprep.subr.mxu0 %v302
    %378 = vmatpush1.msra.mxu0 %v301
    %379 = vmatprep.mubr.f32.mxu0 %v238
    %380 = vmatmul.mubr.f32.gmra.mrb[0].mxu0 %v237
    %v381 = vpop.f32.mrb[0].mxu0
    %v382 = vadd.f32 %v308, %v381
    %v383 = vpop.f32.mrb[0].mxu0
    %v384 = vadd.f32 %v312, %v383
    %385 = vdwg.mxu0
    %v386 = vmax.f32 %v382, 0.0
    %v387 = vmax.f32 %v384, 0.0
    %v388 = vld [vmem:[#allocation11] sm:$0xff]
    %v389 = vld [vmem:[#allocation11 + $0x8] sm:$0xff]
    %v390 = vld [vmem:[#allocation11 + $0x10] sm:$0xff]
    %v391 = vld [vmem:[#allocation11 + $0x18] sm:$0xff]
    %v392 = vld [vmem:[#allocation11 + $0x20] sm:$0xff]
    %v393 = vld [vmem:[#allocation11 + $0x28] sm:$0xff]
    %v394 = vld [vmem:[#allocation11 + $0x30] sm:$0xff]
    %v395 = vld [vmem:[#allocation11 + $0x38] sm:$0xff]
    %v396 = vld [vmem:[#allocation11 + $0x40] sm:$0xff]
    %v397 = vld [vmem:[#allocation11 + $0x48] sm:$0xff]
    %v398 = vld [vmem:[#allocation11 + $0x50] sm:$0xff]
    %v399 = vld [vmem:[#allocation11 + $0x58] sm:$0xff]
    %v400 = vld [vmem:[#allocation11 + $0x60] sm:$0xff]
    %v401 = vld [vmem:[#allocation11 + $0x68] sm:$0xff]
    %v402 = vld [vmem:[#allocation11 + $0x70] sm:$0xff]
    %v403 = vld [vmem:[#allocation11 + $0x78] sm:$0xff]
    %v404 = vld [vmem:[#allocation11 + $0x80] sm:$0xff]
    %v405 = vld [vmem:[#allocation11 + $0x88] sm:$0xff]
    %v406 = vld [vmem:[#allocation11 + $0x90] sm:$0xff]
    %v407 = vld [vmem:[#allocation11 + $0x98] sm:$0xff]
    %v408 = vld [vmem:[#allocation11 + $0xa0] sm:$0xff]
    %v409 = vld [vmem:[#allocation11 + $0xa8] sm:$0xff]
    %v410 = vld [vmem:[#allocation11 + $0xb0] sm:$0xff]
    %v411 = vld [vmem:[#allocation11 + $0xb8] sm:$0xff]
    %v412 = vld [vmem:[#allocation11 + $0xc0] sm:$0xff]
    %v413 = vld [vmem:[#allocation11 + $0xc8] sm:$0xff]
    %v414 = vld [vmem:[#allocation11 + $0xd0] sm:$0xff]
    %v415 = vld [vmem:[#allocation11 + $0xd8] sm:$0xff]
    %v416 = vld [vmem:[#allocation11 + $0xe0] sm:$0xff]
    %v417 = vld [vmem:[#allocation11 + $0xe8] sm:$0xff]
    %v418 = vld [vmem:[#allocation11 + $0xf0] sm:$0xff]
    %v419 = vld [vmem:[#allocation11 + $0xf8] sm:$0xff]
    %v420 = vld [vmem:[#allocation11 + $0x100] sm:$0xff]
    %v421 = vld [vmem:[#allocation11 + $0x108] sm:$0xff]
    %v422 = vld [vmem:[#allocation11 + $0x110] sm:$0xff]
    %v423 = vld [vmem:[#allocation11 + $0x118] sm:$0xff]
    %v424 = vld [vmem:[#allocation11 + $0x120] sm:$0xff]
    %v425 = vld [vmem:[#allocation11 + $0x128] sm:$0xff]
    %v426 = vld [vmem:[#allocation11 + $0x130] sm:$0xff]
    %v427 = vld [vmem:[#allocation11 + $0x138] sm:$0xff]
    %v428 = vld [vmem:[#allocation11 + $0x140] sm:$0xff]
    %v429 = vld [vmem:[#allocation11 + $0x148] sm:$0xff]
    %v430 = vld [vmem:[#allocation11 + $0x150] sm:$0xff]
    %v431 = vld [vmem:[#allocation11 + $0x158] sm:$0xff]
    %v432 = vld [vmem:[#allocation11 + $0x160] sm:$0xff]
    %v433 = vld [vmem:[#allocation11 + $0x168] sm:$0xff]
    %v434 = vld [vmem:[#allocation11 + $0x170] sm:$0xff]
    %v435 = vld [vmem:[#allocation11 + $0x178] sm:$0xff]
    %v436 = vld [vmem:[#allocation11 + $0x180] sm:$0xff]
    %v437 = vld [vmem:[#allocation11 + $0x188] sm:$0xff]
    %v438 = vld [vmem:[#allocation11 + $0x190] sm:$0xff]
    %v439 = vld [vmem:[#allocation11 + $0x198] sm:$0xff]
    %v440 = vld [vmem:[#allocation11 + $0x1a0] sm:$0xff]
    %v441 = vld [vmem:[#allocation11 + $0x1a8] sm:$0xff]
    %v442 = vld [vmem:[#allocation11 + $0x1b0] sm:$0xff]
    %v443 = vld [vmem:[#allocation11 + $0x1b8] sm:$0xff]
    %v444 = vld [vmem:[#allocation11 + $0x1c0] sm:$0xff]
    %v445 = vld [vmem:[#allocation11 + $0x1c8] sm:$0xff]
    %v446 = vld [vmem:[#allocation11 + $0x1d0] sm:$0xff]
    %v447 = vld [vmem:[#allocation11 + $0x1d8] sm:$0xff]
    %v448 = vld [vmem:[#allocation11 + $0x1e0] sm:$0xff]
    %v449 = vld [vmem:[#allocation11 + $0x1e8] sm:$0xff]
    %v450 = vld [vmem:[#allocation11 + $0x1f0] sm:$0xff]
    %v451 = vld [vmem:[#allocation11 + $0x1f8] sm:$0xff]
    %v452 = vld [vmem:[#allocation13] sm:$0x3]
    %v454 = vlaneseq
    %v455 = vshrl.u32 %v454, 7
    %v456 = vsub.s32 0, %v455
    %v457 = vrot.slane %v452, %v456
    %v458 = vlaneseq
    %v459 = vshrl.u32 %v458, 7
    %v460 = vsub.s32 1, %v459
    %v461 = vrot.slane %v452, %v460
    %464 = vmatprep.subr.mxu0 %v389
    %465 = vmatpush1.msra.mxu0 %v388
    %466 = vmatprep.subr.mxu0 %v391
    %467 = vmatpush1.msra.mxu0 %v390
    %468 = vmatprep.subr.mxu0 %v393
    %469 = vmatpush1.msra.mxu0 %v392
    %470 = vmatprep.subr.mxu0 %v395
    %471 = vmatpush1.msra.mxu0 %v394
    %472 = vmatprep.subr.mxu0 %v397
    %473 = vmatpush1.msra.mxu0 %v396
    %474 = vmatprep.subr.mxu0 %v399
    %475 = vmatpush1.msra.mxu0 %v398
    %476 = vmatprep.subr.mxu0 %v401
    %477 = vmatpush1.msra.mxu0 %v400
    %478 = vmatprep.subr.mxu0 %v403
    %479 = vmatpush1.msra.mxu0 %v402
    %480 = vmatprep.subr.mxu0 %v405
    %481 = vmatpush1.msra.mxu0 %v404
    %482 = vmatprep.subr.mxu0 %v407
    %483 = vmatpush1.msra.mxu0 %v406
    %484 = vmatprep.subr.mxu0 %v409
    %485 = vmatpush1.msra.mxu0 %v408
    %486 = vmatprep.subr.mxu0 %v411
    %487 = vmatpush1.msra.mxu0 %v410
    %488 = vmatprep.subr.mxu0 %v413
    %489 = vmatpush1.msra.mxu0 %v412
    %490 = vmatprep.subr.mxu0 %v415
    %491 = vmatpush1.msra.mxu0 %v414
    %492 = vmatprep.subr.mxu0 %v417
    %493 = vmatpush1.msra.mxu0 %v416
    %494 = vmatprep.subr.mxu0 %v419
    %495 = vmatpush1.msra.mxu0 %v418
    %496 = vmatprep.subr.mxu0 %v421
    %497 = vmatpush1.msra.mxu0 %v420
    %498 = vmatprep.subr.mxu0 %v423
    %499 = vmatpush1.msra.mxu0 %v422
    %500 = vmatprep.subr.mxu0 %v425
    %501 = vmatpush1.msra.mxu0 %v424
    %502 = vmatprep.subr.mxu0 %v427
    %503 = vmatpush1.msra.mxu0 %v426
    %504 = vmatprep.subr.mxu0 %v429
    %505 = vmatpush1.msra.mxu0 %v428
    %506 = vmatprep.subr.mxu0 %v431
    %507 = vmatpush1.msra.mxu0 %v430
    %508 = vmatprep.subr.mxu0 %v433
    %509 = vmatpush1.msra.mxu0 %v432
    %510 = vmatprep.subr.mxu0 %v435
    %511 = vmatpush1.msra.mxu0 %v434
    %512 = vmatprep.subr.mxu0 %v437
    %513 = vmatpush1.msra.mxu0 %v436
    %514 = vmatprep.subr.mxu0 %v439
    %515 = vmatpush1.msra.mxu0 %v438
    %516 = vmatprep.subr.mxu0 %v441
    %517 = vmatpush1.msra.mxu0 %v440
    %518 = vmatprep.subr.mxu0 %v443
    %519 = vmatpush1.msra.mxu0 %v442
    %520 = vmatprep.subr.mxu0 %v445
    %521 = vmatpush1.msra.mxu0 %v444
    %522 = vmatprep.subr.mxu0 %v447
    %523 = vmatpush1.msra.mxu0 %v446
    %524 = vmatprep.subr.mxu0 %v449
    %525 = vmatpush1.msra.mxu0 %v448
    %526 = vmatprep.subr.mxu0 %v451
    %527 = vmatpush1.msra.mxu0 %v450
    %528 = vmatprep.mubr.f32.mxu0 %v387
    %529 = vmatmul.mubr.f32.gmra.mrb[0].mxu0 %v386
    %v530 = vpop.f32.mrb[0].mxu0
    %v531 = vadd.f32 %v457, %v530
    %v532 = vpop.f32.mrb[0].mxu0
    %v533 = vadd.f32 %v461, %v532
    %534 = vdwg.mxu0
    %v535 = vmax.f32 %v531, 0.0
    %v536 = vmax.f32 %v533, 0.0
    %v537 = vld [vmem:[#allocation14] sm:$0xff]
    %v538 = vld [vmem:[#allocation14 + $0x8] sm:$0xff]
    %v539 = vld [vmem:[#allocation14 + $0x10] sm:$0xff]
    %v540 = vld [vmem:[#allocation14 + $0x18] sm:$0xff]
    %v541 = vld [vmem:[#allocation14 + $0x20] sm:$0xff]
    %v542 = vld [vmem:[#allocation14 + $0x28] sm:$0xff]
    %v543 = vld [vmem:[#allocation14 + $0x30] sm:$0xff]
    %v544 = vld [vmem:[#allocation14 + $0x38] sm:$0xff]
    %v545 = vld [vmem:[#allocation14 + $0x40] sm:$0xff]
    %v546 = vld [vmem:[#allocation14 + $0x48] sm:$0xff]
    %v547 = vld [vmem:[#allocation14 + $0x50] sm:$0xff]
    %v548 = vld [vmem:[#allocation14 + $0x58] sm:$0xff]
    %v549 = vld [vmem:[#allocation14 + $0x60] sm:$0xff]
    %v550 = vld [vmem:[#allocation14 + $0x68] sm:$0xff]
    %v551 = vld [vmem:[#allocation14 + $0x70] sm:$0xff]
    %v552 = vld [vmem:[#allocation14 + $0x78] sm:$0xff]
    %v553 = vld [vmem:[#allocation14 + $0x80] sm:$0xff]
    %v554 = vld [vmem:[#allocation14 + $0x88] sm:$0xff]
    %v555 = vld [vmem:[#allocation14 + $0x90] sm:$0xff]
    %v556 = vld [vmem:[#allocation14 + $0x98] sm:$0xff]
    %v557 = vld [vmem:[#allocation14 + $0xa0] sm:$0xff]
    %v558 = vld [vmem:[#allocation14 + $0xa8] sm:$0xff]
    %v559 = vld [vmem:[#allocation14 + $0xb0] sm:$0xff]
    %v560 = vld [vmem:[#allocation14 + $0xb8] sm:$0xff]
    %v561 = vld [vmem:[#allocation14 + $0xc0] sm:$0xff]
    %v562 = vld [vmem:[#allocation14 + $0xc8] sm:$0xff]
    %v563 = vld [vmem:[#allocation14 + $0xd0] sm:$0xff]
    %v564 = vld [vmem:[#allocation14 + $0xd8] sm:$0xff]
    %v565 = vld [vmem:[#allocation14 + $0xe0] sm:$0xff]
    %v566 = vld [vmem:[#allocation14 + $0xe8] sm:$0xff]
    %v567 = vld [vmem:[#allocation14 + $0xf0] sm:$0xff]
    %v568 = vld [vmem:[#allocation14 + $0xf8] sm:$0xff]
    %v569 = vld [vmem:[#allocation16] sm:$0x1]
    %v571 = vlaneseq
    %v572 = vshrl.u32 %v571, 7
    %v573 = vsub.s32 0, %v572
    %v574 = vrot.slane %v569, %v573
    %576 = vmatprep.subr.mxu0 0.0
    %577 = vmatpush1.msra.mxu0 %v537
    %578 = vmatprep.subr.mxu0 0.0
    %579 = vmatpush1.msra.mxu0 %v538
    %580 = vmatprep.subr.mxu0 0.0
    %581 = vmatpush1.msra.mxu0 %v539
    %582 = vmatprep.subr.mxu0 0.0
    %583 = vmatpush1.msra.mxu0 %v540
    %584 = vmatprep.subr.mxu0 0.0
    %585 = vmatpush1.msra.mxu0 %v541
    %586 = vmatprep.subr.mxu0 0.0
    %587 = vmatpush1.msra.mxu0 %v542
    %588 = vmatprep.subr.mxu0 0.0
    %589 = vmatpush1.msra.mxu0 %v543
    %590 = vmatprep.subr.mxu0 0.0
    %591 = vmatpush1.msra.mxu0 %v544
    %592 = vmatprep.subr.mxu0 0.0
    %593 = vmatpush1.msra.mxu0 %v545
    %594 = vmatprep.subr.mxu0 0.0
    %595 = vmatpush1.msra.mxu0 %v546
    %596 = vmatprep.subr.mxu0 0.0
    %597 = vmatpush1.msra.mxu0 %v547
    %598 = vmatprep.subr.mxu0 0.0
    %599 = vmatpush1.msra.mxu0 %v548
    %600 = vmatprep.subr.mxu0 0.0
    %601 = vmatpush1.msra.mxu0 %v549
    %602 = vmatprep.subr.mxu0 0.0
    %603 = vmatpush1.msra.mxu0 %v550
    %604 = vmatprep.subr.mxu0 0.0
    %605 = vmatpush1.msra.mxu0 %v551
    %606 = vmatprep.subr.mxu0 0.0
    %607 = vmatpush1.msra.mxu0 %v552
    %608 = vmatprep.subr.mxu0 0.0
    %609 = vmatpush1.msra.mxu0 %v553
    %610 = vmatprep.subr.mxu0 0.0
    %611 = vmatpush1.msra.mxu0 %v554
    %612 = vmatprep.subr.mxu0 0.0
    %613 = vmatpush1.msra.mxu0 %v555
    %614 = vmatprep.subr.mxu0 0.0
    %615 = vmatpush1.msra.mxu0 %v556
    %616 = vmatprep.subr.mxu0 0.0
    %617 = vmatpush1.msra.mxu0 %v557
    %618 = vmatprep.subr.mxu0 0.0
    %619 = vmatpush1.msra.mxu0 %v558
    %620 = vmatprep.subr.mxu0 0.0
    %621 = vmatpush1.msra.mxu0 %v559
    %622 = vmatprep.subr.mxu0 0.0
    %623 = vmatpush1.msra.mxu0 %v560
    %624 = vmatprep.subr.mxu0 0.0
    %625 = vmatpush1.msra.mxu0 %v561
    %626 = vmatprep.subr.mxu0 0.0
    %627 = vmatpush1.msra.mxu0 %v562
    %628 = vmatprep.subr.mxu0 0.0
    %629 = vmatpush1.msra.mxu0 %v563
    %630 = vmatprep.subr.mxu0 0.0
    %631 = vmatpush1.msra.mxu0 %v564
    %632 = vmatprep.subr.mxu0 0.0
    %633 = vmatpush1.msra.mxu0 %v565
    %634 = vmatprep.subr.mxu0 0.0
    %635 = vmatpush1.msra.mxu0 %v566
    %636 = vmatprep.subr.mxu0 0.0
    %637 = vmatpush1.msra.mxu0 %v567
    %638 = vmatprep.subr.mxu0 0.0
    %639 = vmatpush1.msra.mxu0 %v568
    %640 = vmatprep.mubr.f32.mxu0 %v536
    %641 = vmatmul.mubr.f32.gmra.mrb[0].mxu0 %v535
    %v642 = vpop.f32.mrb[0].mxu0
    %v643 = vadd.f32 %v574, %v642
    %v644 = vpop.f32.mrb[0].mxu0
    %645 = vdwg.mxu0
    %v646 = vtanh.pop %v643
    %647 = vst [vmem:[#allocation17] sm:$0xff] %v646
    // Predicated region
    $region74: #{tpu_custom_call.1} parent=1 // pred_check
      _
    $region75: #{tpu_custom_call.1} parent=1 // pred_check_branch
      %649 = sbr.rel (0) target = $region77
    $region76: #{tpu_custom_call.1} parent=1 // pred_region
      %s651 = ssub.s32 128, 128
      %652 = vsyncadd [#allocation4], %s651
      %s654 = sshll.u32 [#allocation17], 4
      %s655 = int_to_ptr.vmem [resolvable:$true] %s654
      %657 = dma.vmem_to_hbm [thread:$0]  %s655, 128, %s9, [#allocation4]
    $region77: #{tpu_custom_call.1} parent=1 // pred_fallthru
      _
    // Predicated region
    $region78: #{tpu_custom_call.1} parent=1 // pred_check
      _
    $region79: #{tpu_custom_call.1} parent=1 // pred_check_branch
      %659 = sbr.rel (0) target = $region81
    $region80: #{tpu_custom_call.1} parent=1 // pred_region
      %660 = dma.done [#allocation4], 128
    $region81: #{tpu_custom_call.1} parent=1 // pred_fallthru
      _
    %661 = vsyncpa [#allocation3], 1
    %662 = vsyncpa [#allocation6], 1
    %663 = vsyncpa [#allocation9], 1
    %664 = vsyncpa [#allocation12], 1
    %665 = vsyncpa [#allocation15], 1
    %666 = vsyncpa [#allocation4], 1

</llo_original>
